<compile_context>
chip_gen: v7x
topology: tpu7x:2x2x1
jax: 0.10.0
libtpu: 0.0.40
codegen_flags: <defaults>
</compile_context>

<pallas_src>
import functools

import jax
import jax.numpy as jnp
import numpy as np
from jax.experimental import pallas as pl
from jax.experimental.pallas import tpu as pltpu


def mlp_kernel(x_ref, w1_ref, wh_ref, wc_ref, o_ref):
    # x_ref:  (tile, pack*(D+1))  -- 'pack' batch rows packed into the lane dim
    # w1_ref: (pack*(D+1), pack*m)   block-diag of linear1.weight.T
    # wh_ref: (pack*m, pack*m)       block-diag of hidden.weight.T
    # wc_ref: (pack*m, pack)         block-diag of (hidden.T @ linear2.T) / m
    x = x_ref[...]
    h = jnp.tanh(jnp.dot(x, w1_ref[...], preferred_element_type=jnp.float32))
    for _ in range(4):  # unrolled at trace time
        h = jnp.tanh(jnp.dot(h, wh_ref[...], preferred_element_type=jnp.float32))
    # fc11 (hidden application with NO tanh) + linear2 + /m folded into wc
    o_ref[...] = jnp.dot(h, wc_ref[...],
                         preferred_element_type=jnp.float32).astype(o_ref.dtype)


def _block_diag(w, p):
    """Exact p-fold block-diagonal replication of a 2-D weight."""
    r, c = w.shape
    out = jnp.zeros((p * r, p * c), w.dtype)
    for i in range(p):
        out = out.at[i * r:(i + 1) * r, i * c:(i + 1) * c].set(w)
    return out


@functools.partial(jax.jit, static_argnames=("m", "pack", "tile_packed_rows"))
def mlp_forward(x, w1, wh, w2, m, pack=4, tile_packed_rows=1024):
    """x: (N, D+1); w1: (m, D+1); wh: (m, m); w2: (1, m)  (PyTorch layouts)."""
    N, Din = x.shape
    mm = w1.shape[0]
    assert tile_packed_rows % 8 == 0

    x = x.astype(jnp.float32)
    w1t = jnp.asarray(w1, jnp.float32).T                                # (D+1, m)
    wht = jnp.asarray(wh, jnp.float32).T                                # (m, m)
    w_comb = (wht @ jnp.asarray(w2, jnp.float32).T) * jnp.float32(1.0 / m)  # (m, 1)

    # Block-diagonal packing: 'pack' batch rows share one vector row.
    w1p = _block_diag(w1t, pack)         # (pack*(D+1), pack*m)
    whp = _block_diag(wht, pack)         # (pack*m,     pack*m)
    wcp = _block_diag(w_comb, pack)      # (pack*m,     pack)

    # Tiny tail pad (< pack rows) only when N % pack != 0; grid-level
    # raggedness is handled by Pallas' masked partial last block, not padding.
    rem = N % pack
    n_rows = N if rem == 0 else N + (pack - rem)
    if rem:
        x = jnp.pad(x, ((0, pack - rem), (0, 0)))
    np_rows = n_rows // pack
    xp = x.reshape(np_rows, pack * Din)   # free, contiguous reshape

    tile = np_rows if np_rows <= tile_packed_rows else tile_packed_rows
    grid = (pl.cdiv(np_rows, tile),)

    out = pl.pallas_call(
        mlp_kernel,
        out_shape=jax.ShapeDtypeStruct((np_rows, pack), jnp.float32),
        grid=grid,
        in_specs=[
            pl.BlockSpec((tile, pack * Din), lambda i: (i, 0)),        # packed x tiles
            pl.BlockSpec((pack * Din, pack * mm), lambda i: (0, 0)),   # weights resident
            pl.BlockSpec((pack * mm, pack * mm), lambda i: (0, 0)),
            pl.BlockSpec((pack * mm, pack), lambda i: (0, 0)),
        ],
        out_specs=pl.BlockSpec((tile, pack), lambda i: (i, 0)),
        compiler_params=pltpu.CompilerParams(
            dimension_semantics=("parallel",)),
    )(xp, w1p, whp, wcp)

    return out.reshape(n_rows, 1)[:N]


def kaiming_normal_tanh(key, shape):
    # PyTorch kaiming_normal_ with nonlinearity='tanh': gain = 5/3, std = gain/sqrt(fan_in)
    fan_in = shape[1]
    std = (5.0 / 3.0) / np.sqrt(fan_in)
    return std * jax.random.normal(key, shape, dtype=jnp.float32)


def reference_forward(x, w1, wh, w2, m):
    h = jnp.tanh(x @ w1.T)
    for _ in range(4):
        h = jnp.tanh(h @ wh.T)
    h = h @ wh.T          # fc11: hidden application with NO tanh
    return (h @ w2.T) / m


if __name__ == "__main__":
    # Small shapes consistent with the module: batch N=8, D=31 -> D+1=32, m=32
    N, D, m = 8, 31, 32

    key = jax.random.PRNGKey(0)
    kx, k1, kh, k2 = jax.random.split(key, 4)

    x = jax.random.normal(kx, (N, D + 1), dtype=jnp.float32)
    w1 = kaiming_normal_tanh(k1, (m, D + 1))   # linear1.weight
    wh = kaiming_normal_tanh(kh, (m, m))       # hidden.weight (shared across layers)
    w2 = kaiming_normal_tanh(k2, (1, m))       # linear2.weight

    out = mlp_forward(x, w1, wh, w2, m=m)
    out = jax.block_until_ready(out)

    ref = reference_forward(x, w1, wh, w2, m)
    np.testing.assert_allclose(np.asarray(out), np.asarray(ref), rtol=1e-5, atol=1e-5)

    print("KERNEL_OK")
</pallas_src>

<mosaic_0001>
module attributes {stable_mosaic.version = 11 : i64} {
  func.func @mlp_kernel(%arg0: i32, %arg1: memref<2x128xf32, #tpu.memory_space<vmem>>, %arg2: memref<128x128xf32, #tpu.memory_space<vmem>>, %arg3: memref<128x128xf32, #tpu.memory_space<vmem>>, %arg4: memref<128x4xf32, #tpu.memory_space<vmem>>, %arg5: memref<2x4xf32, #tpu.memory_space<vmem>>) attributes {dimension_semantics = [#tpu.dimension_semantics<parallel>], iteration_bounds = array<i64: 1>, scalar_prefetch = 0 : i64, scratch_operands = 0 : i64, tpu.core_type = #tpu.core_type<tc>, window_params = [{transform_indices = @transform_0, window_bounds = array<i64: 2, 128>}, {pipeline_mode = #tpu.pipeline_mode<synchronous>, transform_indices = @transform_1, window_bounds = array<i64: 128, 128>}, {pipeline_mode = #tpu.pipeline_mode<synchronous>, transform_indices = @transform_2, window_bounds = array<i64: 128, 128>}, {pipeline_mode = #tpu.pipeline_mode<synchronous>, transform_indices = @transform_3, window_bounds = array<i64: 128, 4>}, {transform_indices = @transform_4, window_bounds = array<i64: 2, 4>}]} {
    %c0 = arith.constant 0 : index
    %c0_0 = arith.constant 0 : index
    %0 = vector.load %arg1[%c0, %c0_0] : memref<2x128xf32, #tpu.memory_space<vmem>>, vector<2x128xf32>
    %c0_1 = arith.constant 0 : index
    %c0_2 = arith.constant 0 : index
    %1 = vector.load %arg2[%c0_1, %c0_2] : memref<128x128xf32, #tpu.memory_space<vmem>>, vector<128x128xf32>
    %cst = arith.constant dense<0.000000e+00> : vector<2x128xf32>
    %2 = tpu.matmul %0, %1, %cst {dimension_numbers = #tpu.dot_dimension_numbers<[1], [0], [0], [1], [0, 0, 1, 1], [], []>} : vector<2x128xf32>, vector<128x128xf32>, vector<2x128xf32> -> vector<2x128xf32>
    %3 = math.tanh %2 : vector<2x128xf32>
    %c0_3 = arith.constant 0 : index
    %c0_4 = arith.constant 0 : index
    %4 = vector.load %arg3[%c0_3, %c0_4] : memref<128x128xf32, #tpu.memory_space<vmem>>, vector<128x128xf32>
    %cst_5 = arith.constant dense<0.000000e+00> : vector<2x128xf32>
    %5 = tpu.matmul %3, %4, %cst_5 {dimension_numbers = #tpu.dot_dimension_numbers<[1], [0], [0], [1], [0, 0, 1, 1], [], []>} : vector<2x128xf32>, vector<128x128xf32>, vector<2x128xf32> -> vector<2x128xf32>
    %6 = math.tanh %5 : vector<2x128xf32>
    %c0_6 = arith.constant 0 : index
    %c0_7 = arith.constant 0 : index
    %7 = vector.load %arg3[%c0_6, %c0_7] : memref<128x128xf32, #tpu.memory_space<vmem>>, vector<128x128xf32>
    %cst_8 = arith.constant dense<0.000000e+00> : vector<2x128xf32>
    %8 = tpu.matmul %6, %7, %cst_8 {dimension_numbers = #tpu.dot_dimension_numbers<[1], [0], [0], [1], [0, 0, 1, 1], [], []>} : vector<2x128xf32>, vector<128x128xf32>, vector<2x128xf32> -> vector<2x128xf32>
    %9 = math.tanh %8 : vector<2x128xf32>
    %c0_9 = arith.constant 0 : index
    %c0_10 = arith.constant 0 : index
    %10 = vector.load %arg3[%c0_9, %c0_10] : memref<128x128xf32, #tpu.memory_space<vmem>>, vector<128x128xf32>
    %cst_11 = arith.constant dense<0.000000e+00> : vector<2x128xf32>
    %11 = tpu.matmul %9, %10, %cst_11 {dimension_numbers = #tpu.dot_dimension_numbers<[1], [0], [0], [1], [0, 0, 1, 1], [], []>} : vector<2x128xf32>, vector<128x128xf32>, vector<2x128xf32> -> vector<2x128xf32>
    %12 = math.tanh %11 : vector<2x128xf32>
    %c0_12 = arith.constant 0 : index
    %c0_13 = arith.constant 0 : index
    %13 = vector.load %arg3[%c0_12, %c0_13] : memref<128x128xf32, #tpu.memory_space<vmem>>, vector<128x128xf32>
    %cst_14 = arith.constant dense<0.000000e+00> : vector<2x128xf32>
    %14 = tpu.matmul %12, %13, %cst_14 {dimension_numbers = #tpu.dot_dimension_numbers<[1], [0], [0], [1], [0, 0, 1, 1], [], []>} : vector<2x128xf32>, vector<128x128xf32>, vector<2x128xf32> -> vector<2x128xf32>
    %15 = math.tanh %14 : vector<2x128xf32>
    %c0_15 = arith.constant 0 : index
    %c0_16 = arith.constant 0 : index
    %16 = vector.load %arg4[%c0_15, %c0_16] : memref<128x4xf32, #tpu.memory_space<vmem>>, vector<128x4xf32>
    %cst_17 = arith.constant dense<0.000000e+00> : vector<2x4xf32>
    %17 = tpu.matmul %15, %16, %cst_17 {dimension_numbers = #tpu.dot_dimension_numbers<[1], [0], [0], [1], [0, 0, 1, 1], [], []>} : vector<2x128xf32>, vector<128x4xf32>, vector<2x4xf32> -> vector<2x4xf32>
    %c0_18 = arith.constant 0 : index
    %c0_19 = arith.constant 0 : index
    %18 = vector.load %arg5[%c0_18, %c0_19] : memref<2x4xf32, #tpu.memory_space<vmem>>, vector<2x4xf32>
    tpu.vector_store %arg5[%c0_18, %c0_19], %17 {strides = array<i32>} : memref<2x4xf32, #tpu.memory_space<vmem>>, vector<2x4xf32>,
    return
  }
  func.func @transform_0(%arg0: i32) -> (i32, i32) {
    %c0_i32 = arith.constant 0 : i32
    %c0_i32_0 = arith.constant 0 : i32
    return %arg0, %c0_i32 : i32, i32
  }
  func.func @transform_1(%arg0: i32) -> (i32, i32) {
    %c0_i32 = arith.constant 0 : i32
    %c0_i32_0 = arith.constant 0 : i32
    %c0_i32_1 = arith.constant 0 : i32
    return %c0_i32, %c0_i32_0 : i32, i32
  }
  func.func @transform_2(%arg0: i32) -> (i32, i32) {
    %c0_i32 = arith.constant 0 : i32
    %c0_i32_0 = arith.constant 0 : i32
    %c0_i32_1 = arith.constant 0 : i32
    return %c0_i32, %c0_i32_0 : i32, i32
  }
  func.func @transform_3(%arg0: i32) -> (i32, i32) {
    %c0_i32 = arith.constant 0 : i32
    %c0_i32_0 = arith.constant 0 : i32
    %c0_i32_1 = arith.constant 0 : i32
    return %c0_i32, %c0_i32_0 : i32, i32
  }
  func.func @transform_4(%arg0: i32) -> (i32, i32) {
    %c0_i32 = arith.constant 0 : i32
    %c0_i32_0 = arith.constant 0 : i32
    return %arg0, %c0_i32 : i32, i32
  }
}

</mosaic_0001>

<llo_original>
// kernel: mlp_forward.1
$region0: #{mlp_forward.1}
  #allocation0 [shape = 'u32[]', space=smem, size = 0x4, offset = 0x4, fixed_abs, tag = 'smem constant byte address 0x4 - core index']
  #allocation1 [shape = 'u32[144,128]{1,0:T(1,128)}', space=vmem, size = 0x12000, scoped, tag = 'internal scratch']
  %s0 = inlined_call_operand.vmem [shape: f32[2,128], index: 0, kind: input, shape index: {}]
  %s1 = inlined_call_operand.vmem [shape: f32[128,128], index: 1, kind: input, shape index: {}]
  %s2 = inlined_call_operand.vmem [shape: f32[128,128], index: 2, kind: input, shape index: {}]
  %s3 = inlined_call_operand.vmem [shape: f32[128,4], index: 3, kind: input, shape index: {}]
  %s4 = inlined_call_operand.vmem [shape: f32[2,4], index: 4, kind: output, shape index: {}]
  %s5 = sld [smem:[#allocation0]]
  $region26: #{mlp_forward.1} parent=0
    _
  %s7 = ssub.s32 1, %s5
  %s8 = scalar_select 0, %s7, %s5
  // Predicated region
  $region2: #{mlp_forward.1} parent=0 // pred_check
    _
  $region3: #{mlp_forward.1} parent=0 // pred_check_branch
    %10 = sbr.rel (0) target = $region5
  $region4: #{mlp_forward.1} parent=0 // pred_region
    _
  $region5: #{mlp_forward.1} parent=0 // pred_fallthru
    _
  // Predicated region
  $region6: #{mlp_forward.1} parent=0 // pred_check
    _
  $region7: #{mlp_forward.1} parent=0 // pred_check_branch
    %12 = sbr.rel (0) target = $region9
  $region8: #{mlp_forward.1} parent=0 // pred_region
    _
  $region9: #{mlp_forward.1} parent=0 // pred_fallthru
    _
  // Predicated region
  $region10: #{mlp_forward.1} parent=0 // pred_check
    _
  $region11: #{mlp_forward.1} parent=0 // pred_check_branch
    %14 = sbr.rel (0) target = $region13
  $region12: #{mlp_forward.1} parent=0 // pred_region
    _
  $region13: #{mlp_forward.1} parent=0 // pred_fallthru
    _
  // Predicated region
  $region14: #{mlp_forward.1} parent=0 // pred_check
    _
  $region15: #{mlp_forward.1} parent=0 // pred_check_branch
    %16 = sbr.rel (0) target = $region17
  $region16: #{mlp_forward.1} parent=0 // pred_region
    _
  $region17: #{mlp_forward.1} parent=0 // pred_fallthru
    _
  %v17 = vld [vmem:[%s0] sm:$0x3]
  %v18 = vld [vmem:[%s1] sm:$0xff]
  %v19 = vld [vmem:[%s1 + $0x8] sm:$0xff]
  %v20 = vld [vmem:[%s1 + $0x10] sm:$0xff]
  %v21 = vld [vmem:[%s1 + $0x18] sm:$0xff]
  %v22 = vld [vmem:[%s1 + $0x20] sm:$0xff]
  %v23 = vld [vmem:[%s1 + $0x28] sm:$0xff]
  %v24 = vld [vmem:[%s1 + $0x30] sm:$0xff]
  %v25 = vld [vmem:[%s1 + $0x38] sm:$0xff]
  %v26 = vld [vmem:[%s1 + $0x40] sm:$0xff]
  %v27 = vld [vmem:[%s1 + $0x48] sm:$0xff]
  %v28 = vld [vmem:[%s1 + $0x50] sm:$0xff]
  %v29 = vld [vmem:[%s1 + $0x58] sm:$0xff]
  %v30 = vld [vmem:[%s1 + $0x60] sm:$0xff]
  %v31 = vld [vmem:[%s1 + $0x68] sm:$0xff]
  %v32 = vld [vmem:[%s1 + $0x70] sm:$0xff]
  %v33 = vld [vmem:[%s1 + $0x78] sm:$0xff]
  %34 = vmatprep.subr.mxu0 0.0
  %35 = vmatpush1.msra.mxu0 %v18
  %36 = vmatprep.subr.mxu0 0.0
  %37 = vmatpush1.msra.mxu0 %v19
  %38 = vmatprep.subr.mxu0 0.0
  %39 = vmatpush1.msra.mxu0 %v20
  %40 = vmatprep.subr.mxu0 0.0
  %41 = vmatpush1.msra.mxu0 %v21
  %42 = vmatprep.subr.mxu0 0.0
  %43 = vmatpush1.msra.mxu0 %v22
  %44 = vmatprep.subr.mxu0 0.0
  %45 = vmatpush1.msra.mxu0 %v23
  %46 = vmatprep.subr.mxu0 0.0
  %47 = vmatpush1.msra.mxu0 %v24
  %48 = vmatprep.subr.mxu0 0.0
  %49 = vmatpush1.msra.mxu0 %v25
  %50 = vmatprep.subr.mxu0 0.0
  %51 = vmatpush1.msra.mxu0 %v26
  %52 = vmatprep.subr.mxu0 0.0
  %53 = vmatpush1.msra.mxu0 %v27
  %54 = vmatprep.subr.mxu0 0.0
  %55 = vmatpush1.msra.mxu0 %v28
  %56 = vmatprep.subr.mxu0 0.0
  %57 = vmatpush1.msra.mxu0 %v29
  %58 = vmatprep.subr.mxu0 0.0
  %59 = vmatpush1.msra.mxu0 %v30
  %60 = vmatprep.subr.mxu0 0.0
  %61 = vmatpush1.msra.mxu0 %v31
  %62 = vmatprep.subr.mxu0 0.0
  %63 = vmatpush1.msra.mxu0 %v32
  %64 = vmatprep.subr.mxu0 0.0
  %65 = vmatpush1.msra.mxu0 %v33
  %66 = vmatprep.subr.mxu0 0.0
  %67 = vmatpush1.msra.mxu0 0.0
  %68 = vmatprep.subr.mxu0 0.0
  %69 = vmatpush1.msra.mxu0 0.0
  %70 = vmatprep.subr.mxu0 0.0
  %71 = vmatpush1.msra.mxu0 0.0
  %72 = vmatprep.subr.mxu0 0.0
  %73 = vmatpush1.msra.mxu0 0.0
  %74 = vmatprep.subr.mxu0 0.0
  %75 = vmatpush1.msra.mxu0 0.0
  %76 = vmatprep.subr.mxu0 0.0
  %77 = vmatpush1.msra.mxu0 0.0
  %78 = vmatprep.subr.mxu0 0.0
  %79 = vmatpush1.msra.mxu0 0.0
  %80 = vmatprep.subr.mxu0 0.0
  %81 = vmatpush1.msra.mxu0 0.0
  %82 = vmatprep.subr.mxu0 0.0
  %83 = vmatpush1.msra.mxu0 0.0
  %84 = vmatprep.subr.mxu0 0.0
  %85 = vmatpush1.msra.mxu0 0.0
  %86 = vmatprep.subr.mxu0 0.0
  %87 = vmatpush1.msra.mxu0 0.0
  %88 = vmatprep.subr.mxu0 0.0
  %89 = vmatpush1.msra.mxu0 0.0
  %90 = vmatprep.subr.mxu0 0.0
  %91 = vmatpush1.msra.mxu0 0.0
  %92 = vmatprep.subr.mxu0 0.0
  %93 = vmatpush1.msra.mxu0 0.0
  %94 = vmatprep.subr.mxu0 0.0
  %95 = vmatpush1.msra.mxu0 0.0
  %96 = vmatprep.subr.mxu0 0.0
  %97 = vmatpush1.msra.mxu0 0.0
  %98 = vmatprep.mubr.f32.mxu0 0.0
  %99 = vmatmul.mubr.f32.gmra.mrb[0].mxu0 %v17
  %v100 = vpop.f32.mrb[0].mxu0
  %v101 = vadd.f32 0.0, %v100
  %v102 = vpop.f32.mrb[0].mxu0
  %103 = vdwg.mxu0
  %v104 = vtanh.pop %v101
  %v105 = vld [vmem:[%s2] sm:$0xff]
  %v106 = vld [vmem:[%s2 + $0x8] sm:$0xff]
  %v107 = vld [vmem:[%s2 + $0x10] sm:$0xff]
  %v108 = vld [vmem:[%s2 + $0x18] sm:$0xff]
  %v109 = vld [vmem:[%s2 + $0x20] sm:$0xff]
  %v110 = vld [vmem:[%s2 + $0x28] sm:$0xff]
  %v111 = vld [vmem:[%s2 + $0x30] sm:$0xff]
  %v112 = vld [vmem:[%s2 + $0x38] sm:$0xff]
  %v113 = vld [vmem:[%s2 + $0x40] sm:$0xff]
  %v114 = vld [vmem:[%s2 + $0x48] sm:$0xff]
  %v115 = vld [vmem:[%s2 + $0x50] sm:$0xff]
  %v116 = vld [vmem:[%s2 + $0x58] sm:$0xff]
  %v117 = vld [vmem:[%s2 + $0x60] sm:$0xff]
  %v118 = vld [vmem:[%s2 + $0x68] sm:$0xff]
  %v119 = vld [vmem:[%s2 + $0x70] sm:$0xff]
  %v120 = vld [vmem:[%s2 + $0x78] sm:$0xff]
  %121 = vmatprep.subr.mxu0 0.0
  %122 = vmatpush1.msra.mxu0 %v105
  %123 = vmatprep.subr.mxu0 0.0
  %124 = vmatpush1.msra.mxu0 %v106
  %125 = vmatprep.subr.mxu0 0.0
  %126 = vmatpush1.msra.mxu0 %v107
  %127 = vmatprep.subr.mxu0 0.0
  %128 = vmatpush1.msra.mxu0 %v108
  %129 = vmatprep.subr.mxu0 0.0
  %130 = vmatpush1.msra.mxu0 %v109
  %131 = vmatprep.subr.mxu0 0.0
  %132 = vmatpush1.msra.mxu0 %v110
  %133 = vmatprep.subr.mxu0 0.0
  %134 = vmatpush1.msra.mxu0 %v111
  %135 = vmatprep.subr.mxu0 0.0
  %136 = vmatpush1.msra.mxu0 %v112
  %137 = vmatprep.subr.mxu0 0.0
  %138 = vmatpush1.msra.mxu0 %v113
  %139 = vmatprep.subr.mxu0 0.0
  %140 = vmatpush1.msra.mxu0 %v114
  %141 = vmatprep.subr.mxu0 0.0
  %142 = vmatpush1.msra.mxu0 %v115
  %143 = vmatprep.subr.mxu0 0.0
  %144 = vmatpush1.msra.mxu0 %v116
  %145 = vmatprep.subr.mxu0 0.0
  %146 = vmatpush1.msra.mxu0 %v117
  %147 = vmatprep.subr.mxu0 0.0
  %148 = vmatpush1.msra.mxu0 %v118
  %149 = vmatprep.subr.mxu0 0.0
  %150 = vmatpush1.msra.mxu0 %v119
  %151 = vmatprep.subr.mxu0 0.0
  %152 = vmatpush1.msra.mxu0 %v120
  %153 = vmatprep.subr.mxu0 0.0
  %154 = vmatpush1.msra.mxu0 0.0
  %155 = vmatprep.subr.mxu0 0.0
  %156 = vmatpush1.msra.mxu0 0.0
  %157 = vmatprep.subr.mxu0 0.0
  %158 = vmatpush1.msra.mxu0 0.0
  %159 = vmatprep.subr.mxu0 0.0
  %160 = vmatpush1.msra.mxu0 0.0
  %161 = vmatprep.subr.mxu0 0.0
  %162 = vmatpush1.msra.mxu0 0.0
  %163 = vmatprep.subr.mxu0 0.0
  %164 = vmatpush1.msra.mxu0 0.0
  %165 = vmatprep.subr.mxu0 0.0
  %166 = vmatpush1.msra.mxu0 0.0
  %167 = vmatprep.subr.mxu0 0.0
  %168 = vmatpush1.msra.mxu0 0.0
  %169 = vmatprep.subr.mxu0 0.0
  %170 = vmatpush1.msra.mxu0 0.0
  %171 = vmatprep.subr.mxu0 0.0
  %172 = vmatpush1.msra.mxu0 0.0
  %173 = vmatprep.subr.mxu0 0.0
  %174 = vmatpush1.msra.mxu0 0.0
  %175 = vmatprep.subr.mxu0 0.0
  %176 = vmatpush1.msra.mxu0 0.0
  %177 = vmatprep.subr.mxu0 0.0
  %178 = vmatpush1.msra.mxu0 0.0
  %179 = vmatprep.subr.mxu0 0.0
  %180 = vmatpush1.msra.mxu0 0.0
  %181 = vmatprep.subr.mxu0 0.0
  %182 = vmatpush1.msra.mxu0 0.0
  %183 = vmatprep.subr.mxu0 0.0
  %184 = vmatpush1.msra.mxu0 0.0
  %185 = vmatprep.mubr.f32.mxu0 0.0
  %186 = vmatmul.mubr.f32.gmra.mrb[0].mxu0 %v104
  %v187 = vpop.f32.mrb[0].mxu0
  %v188 = vadd.f32 0.0, %v187
  %v189 = vpop.f32.mrb[0].mxu0
  %190 = vdwg.mxu0
  %v191 = vtanh.pop %v188
  %192 = vmatprep.subr.mxu0 0.0
  %193 = vmatpush1.msra.mxu0 %v105
  %194 = vmatprep.subr.mxu0 0.0
  %195 = vmatpush1.msra.mxu0 %v106
  %196 = vmatprep.subr.mxu0 0.0
  %197 = vmatpush1.msra.mxu0 %v107
  %198 = vmatprep.subr.mxu0 0.0
  %199 = vmatpush1.msra.mxu0 %v108
  %200 = vmatprep.subr.mxu0 0.0
  %201 = vmatpush1.msra.mxu0 %v109
  %202 = vmatprep.subr.mxu0 0.0
  %203 = vmatpush1.msra.mxu0 %v110
  %204 = vmatprep.subr.mxu0 0.0
  %205 = vmatpush1.msra.mxu0 %v111
  %206 = vmatprep.subr.mxu0 0.0
  %207 = vmatpush1.msra.mxu0 %v112
  %208 = vmatprep.subr.mxu0 0.0
  %209 = vmatpush1.msra.mxu0 %v113
  %210 = vmatprep.subr.mxu0 0.0
  %211 = vmatpush1.msra.mxu0 %v114
  %212 = vmatprep.subr.mxu0 0.0
  %213 = vmatpush1.msra.mxu0 %v115
  %214 = vmatprep.subr.mxu0 0.0
  %215 = vmatpush1.msra.mxu0 %v116
  %216 = vmatprep.subr.mxu0 0.0
  %217 = vmatpush1.msra.mxu0 %v117
  %218 = vmatprep.subr.mxu0 0.0
  %219 = vmatpush1.msra.mxu0 %v118
  %220 = vmatprep.subr.mxu0 0.0
  %221 = vmatpush1.msra.mxu0 %v119
  %222 = vmatprep.subr.mxu0 0.0
  %223 = vmatpush1.msra.mxu0 %v120
  %224 = vmatprep.subr.mxu0 0.0
  %225 = vmatpush1.msra.mxu0 0.0
  %226 = vmatprep.subr.mxu0 0.0
  %227 = vmatpush1.msra.mxu0 0.0
  %228 = vmatprep.subr.mxu0 0.0
  %229 = vmatpush1.msra.mxu0 0.0
  %230 = vmatprep.subr.mxu0 0.0
  %231 = vmatpush1.msra.mxu0 0.0
  %232 = vmatprep.subr.mxu0 0.0
  %233 = vmatpush1.msra.mxu0 0.0
  %234 = vmatprep.subr.mxu0 0.0
  %235 = vmatpush1.msra.mxu0 0.0
  %236 = vmatprep.subr.mxu0 0.0
  %237 = vmatpush1.msra.mxu0 0.0
  %238 = vmatprep.subr.mxu0 0.0
  %239 = vmatpush1.msra.mxu0 0.0
  %240 = vmatprep.subr.mxu0 0.0
  %241 = vmatpush1.msra.mxu0 0.0
  %242 = vmatprep.subr.mxu0 0.0
  %243 = vmatpush1.msra.mxu0 0.0
  %244 = vmatprep.subr.mxu0 0.0
  %245 = vmatpush1.msra.mxu0 0.0
  %246 = vmatprep.subr.mxu0 0.0
  %247 = vmatpush1.msra.mxu0 0.0
  %248 = vmatprep.subr.mxu0 0.0
  %249 = vmatpush1.msra.mxu0 0.0
  %250 = vmatprep.subr.mxu0 0.0
  %251 = vmatpush1.msra.mxu0 0.0
  %252 = vmatprep.subr.mxu0 0.0
  %253 = vmatpush1.msra.mxu0 0.0
  %254 = vmatprep.subr.mxu0 0.0
  %255 = vmatpush1.msra.mxu0 0.0
  %256 = vmatprep.mubr.f32.mxu0 0.0
  %257 = vmatmul.mubr.f32.gmra.mrb[0].mxu0 %v191
  %v258 = vpop.f32.mrb[0].mxu0
  %v259 = vadd.f32 0.0, %v258
  %v260 = vpop.f32.mrb[0].mxu0
  %261 = vdwg.mxu0
  %v262 = vtanh.pop %v259
  %263 = vmatprep.subr.mxu0 0.0
  %264 = vmatpush1.msra.mxu0 %v105
  %265 = vmatprep.subr.mxu0 0.0
  %266 = vmatpush1.msra.mxu0 %v106
  %267 = vmatprep.subr.mxu0 0.0
  %268 = vmatpush1.msra.mxu0 %v107
  %269 = vmatprep.subr.mxu0 0.0
  %270 = vmatpush1.msra.mxu0 %v108
  %271 = vmatprep.subr.mxu0 0.0
  %272 = vmatpush1.msra.mxu0 %v109
  %273 = vmatprep.subr.mxu0 0.0
  %274 = vmatpush1.msra.mxu0 %v110
  %275 = vmatprep.subr.mxu0 0.0
  %276 = vmatpush1.msra.mxu0 %v111
  %277 = vmatprep.subr.mxu0 0.0
  %278 = vmatpush1.msra.mxu0 %v112
  %279 = vmatprep.subr.mxu0 0.0
  %280 = vmatpush1.msra.mxu0 %v113
  %281 = vmatprep.subr.mxu0 0.0
  %282 = vmatpush1.msra.mxu0 %v114
  %283 = vmatprep.subr.mxu0 0.0
  %284 = vmatpush1.msra.mxu0 %v115
  %285 = vmatprep.subr.mxu0 0.0
  %286 = vmatpush1.msra.mxu0 %v116
  %287 = vmatprep.subr.mxu0 0.0
  %288 = vmatpush1.msra.mxu0 %v117
  %289 = vmatprep.subr.mxu0 0.0
  %290 = vmatpush1.msra.mxu0 %v118
  %291 = vmatprep.subr.mxu0 0.0
  %292 = vmatpush1.msra.mxu0 %v119
  %293 = vmatprep.subr.mxu0 0.0
  %294 = vmatpush1.msra.mxu0 %v120
  %295 = vmatprep.subr.mxu0 0.0
  %296 = vmatpush1.msra.mxu0 0.0
  %297 = vmatprep.subr.mxu0 0.0
  %298 = vmatpush1.msra.mxu0 0.0
  %299 = vmatprep.subr.mxu0 0.0
  %300 = vmatpush1.msra.mxu0 0.0
  %301 = vmatprep.subr.mxu0 0.0
  %302 = vmatpush1.msra.mxu0 0.0
  %303 = vmatprep.subr.mxu0 0.0
  %304 = vmatpush1.msra.mxu0 0.0
  %305 = vmatprep.subr.mxu0 0.0
  %306 = vmatpush1.msra.mxu0 0.0
  %307 = vmatprep.subr.mxu0 0.0
  %308 = vmatpush1.msra.mxu0 0.0
  %309 = vmatprep.subr.mxu0 0.0
  %310 = vmatpush1.msra.mxu0 0.0
  %311 = vmatprep.subr.mxu0 0.0
  %312 = vmatpush1.msra.mxu0 0.0
  %313 = vmatprep.subr.mxu0 0.0
  %314 = vmatpush1.msra.mxu0 0.0
  %315 = vmatprep.subr.mxu0 0.0
  %316 = vmatpush1.msra.mxu0 0.0
  %317 = vmatprep.subr.mxu0 0.0
  %318 = vmatpush1.msra.mxu0 0.0
  %319 = vmatprep.subr.mxu0 0.0
  %320 = vmatpush1.msra.mxu0 0.0
  %321 = vmatprep.subr.mxu0 0.0
  %322 = vmatpush1.msra.mxu0 0.0
  %323 = vmatprep.subr.mxu0 0.0
  %324 = vmatpush1.msra.mxu0 0.0
  %325 = vmatprep.subr.mxu0 0.0
  %326 = vmatpush1.msra.mxu0 0.0
  %327 = vmatprep.mubr.f32.mxu0 0.0
  %328 = vmatmul.mubr.f32.gmra.mrb[0].mxu0 %v262
  %v329 = vpop.f32.mrb[0].mxu0
  %v330 = vadd.f32 0.0, %v329
  %v331 = vpop.f32.mrb[0].mxu0
  %332 = vdwg.mxu0
  %v333 = vtanh.pop %v330
  %334 = vmatprep.subr.mxu0 0.0
  %335 = vmatpush1.msra.mxu0 %v105
  %336 = vmatprep.subr.mxu0 0.0
  %337 = vmatpush1.msra.mxu0 %v106
  %338 = vmatprep.subr.mxu0 0.0
  %339 = vmatpush1.msra.mxu0 %v107
  %340 = vmatprep.subr.mxu0 0.0
  %341 = vmatpush1.msra.mxu0 %v108
  %342 = vmatprep.subr.mxu0 0.0
  %343 = vmatpush1.msra.mxu0 %v109
  %344 = vmatprep.subr.mxu0 0.0
  %345 = vmatpush1.msra.mxu0 %v110
  %346 = vmatprep.subr.mxu0 0.0
  %347 = vmatpush1.msra.mxu0 %v111
  %348 = vmatprep.subr.mxu0 0.0
  %349 = vmatpush1.msra.mxu0 %v112
  %350 = vmatprep.subr.mxu0 0.0
  %351 = vmatpush1.msra.mxu0 %v113
  %352 = vmatprep.subr.mxu0 0.0
  %353 = vmatpush1.msra.mxu0 %v114
  %354 = vmatprep.subr.mxu0 0.0
  %355 = vmatpush1.msra.mxu0 %v115
  %356 = vmatprep.subr.mxu0 0.0
  %357 = vmatpush1.msra.mxu0 %v116
  %358 = vmatprep.subr.mxu0 0.0
  %359 = vmatpush1.msra.mxu0 %v117
  %360 = vmatprep.subr.mxu0 0.0
  %361 = vmatpush1.msra.mxu0 %v118
  %362 = vmatprep.subr.mxu0 0.0
  %363 = vmatpush1.msra.mxu0 %v119
  %364 = vmatprep.subr.mxu0 0.0
  %365 = vmatpush1.msra.mxu0 %v120
  %366 = vmatprep.subr.mxu0 0.0
  %367 = vmatpush1.msra.mxu0 0.0
  %368 = vmatprep.subr.mxu0 0.0
  %369 = vmatpush1.msra.mxu0 0.0
  %370 = vmatprep.subr.mxu0 0.0
  %371 = vmatpush1.msra.mxu0 0.0
  %372 = vmatprep.subr.mxu0 0.0
  %373 = vmatpush1.msra.mxu0 0.0
  %374 = vmatprep.subr.mxu0 0.0
  %375 = vmatpush1.msra.mxu0 0.0
  %376 = vmatprep.subr.mxu0 0.0
  %377 = vmatpush1.msra.mxu0 0.0
  %378 = vmatprep.subr.mxu0 0.0
  %379 = vmatpush1.msra.mxu0 0.0
  %380 = vmatprep.subr.mxu0 0.0
  %381 = vmatpush1.msra.mxu0 0.0
  %382 = vmatprep.subr.mxu0 0.0
  %383 = vmatpush1.msra.mxu0 0.0
  %384 = vmatprep.subr.mxu0 0.0
  %385 = vmatpush1.msra.mxu0 0.0
  %386 = vmatprep.subr.mxu0 0.0
  %387 = vmatpush1.msra.mxu0 0.0
  %388 = vmatprep.subr.mxu0 0.0
  %389 = vmatpush1.msra.mxu0 0.0
  %390 = vmatprep.subr.mxu0 0.0
  %391 = vmatpush1.msra.mxu0 0.0
  %392 = vmatprep.subr.mxu0 0.0
  %393 = vmatpush1.msra.mxu0 0.0
  %394 = vmatprep.subr.mxu0 0.0
  %395 = vmatpush1.msra.mxu0 0.0
  %396 = vmatprep.subr.mxu0 0.0
  %397 = vmatpush1.msra.mxu0 0.0
  %398 = vmatprep.mubr.f32.mxu0 0.0
  %399 = vmatmul.mubr.f32.gmra.mrb[0].mxu0 %v333
  %v400 = vpop.f32.mrb[0].mxu0
  %v401 = vadd.f32 0.0, %v400
  %v402 = vpop.f32.mrb[0].mxu0
  %403 = vdwg.mxu0
  %v404 = vtanh.pop %v401
  %v405 = vld [vmem:[%s3] sm:$0xff]
  %v406 = vld [vmem:[%s3 + $0x8] sm:$0xff]
  %v407 = vld [vmem:[%s3 + $0x10] sm:$0xff]
  %v408 = vld [vmem:[%s3 + $0x18] sm:$0xff]
  %v409 = vld [vmem:[%s3 + $0x20] sm:$0xff]
  %v410 = vld [vmem:[%s3 + $0x28] sm:$0xff]
  %v411 = vld [vmem:[%s3 + $0x30] sm:$0xff]
  %v412 = vld [vmem:[%s3 + $0x38] sm:$0xff]
  %v413 = vld [vmem:[%s3 + $0x40] sm:$0xff]
  %v414 = vld [vmem:[%s3 + $0x48] sm:$0xff]
  %v415 = vld [vmem:[%s3 + $0x50] sm:$0xff]
  %v416 = vld [vmem:[%s3 + $0x58] sm:$0xff]
  %v417 = vld [vmem:[%s3 + $0x60] sm:$0xff]
  %v418 = vld [vmem:[%s3 + $0x68] sm:$0xff]
  %v419 = vld [vmem:[%s3 + $0x70] sm:$0xff]
  %v420 = vld [vmem:[%s3 + $0x78] sm:$0xff]
  %421 = vmatprep.subr.mxu0 0.0
  %422 = vmatpush1.msra.mxu0 %v405
  %423 = vmatprep.subr.mxu0 0.0
  %424 = vmatpush1.msra.mxu0 %v406
  %425 = vmatprep.subr.mxu0 0.0
  %426 = vmatpush1.msra.mxu0 %v407
  %427 = vmatprep.subr.mxu0 0.0
  %428 = vmatpush1.msra.mxu0 %v408
  %429 = vmatprep.subr.mxu0 0.0
  %430 = vmatpush1.msra.mxu0 %v409
  %431 = vmatprep.subr.mxu0 0.0
  %432 = vmatpush1.msra.mxu0 %v410
  %433 = vmatprep.subr.mxu0 0.0
  %434 = vmatpush1.msra.mxu0 %v411
  %435 = vmatprep.subr.mxu0 0.0
  %436 = vmatpush1.msra.mxu0 %v412
  %437 = vmatprep.subr.mxu0 0.0
  %438 = vmatpush1.msra.mxu0 %v413
  %439 = vmatprep.subr.mxu0 0.0
  %440 = vmatpush1.msra.mxu0 %v414
  %441 = vmatprep.subr.mxu0 0.0
  %442 = vmatpush1.msra.mxu0 %v415
  %443 = vmatprep.subr.mxu0 0.0
  %444 = vmatpush1.msra.mxu0 %v416
  %445 = vmatprep.subr.mxu0 0.0
  %446 = vmatpush1.msra.mxu0 %v417
  %447 = vmatprep.subr.mxu0 0.0
  %448 = vmatpush1.msra.mxu0 %v418
  %449 = vmatprep.subr.mxu0 0.0
  %450 = vmatpush1.msra.mxu0 %v419
  %451 = vmatprep.subr.mxu0 0.0
  %452 = vmatpush1.msra.mxu0 %v420
  %453 = vmatprep.subr.mxu0 0.0
  %454 = vmatpush1.msra.mxu0 0.0
  %455 = vmatprep.subr.mxu0 0.0
  %456 = vmatpush1.msra.mxu0 0.0
  %457 = vmatprep.subr.mxu0 0.0
  %458 = vmatpush1.msra.mxu0 0.0
  %459 = vmatprep.subr.mxu0 0.0
  %460 = vmatpush1.msra.mxu0 0.0
  %461 = vmatprep.subr.mxu0 0.0
  %462 = vmatpush1.msra.mxu0 0.0
  %463 = vmatprep.subr.mxu0 0.0
  %464 = vmatpush1.msra.mxu0 0.0
  %465 = vmatprep.subr.mxu0 0.0
  %466 = vmatpush1.msra.mxu0 0.0
  %467 = vmatprep.subr.mxu0 0.0
  %468 = vmatpush1.msra.mxu0 0.0
  %469 = vmatprep.subr.mxu0 0.0
  %470 = vmatpush1.msra.mxu0 0.0
  %471 = vmatprep.subr.mxu0 0.0
  %472 = vmatpush1.msra.mxu0 0.0
  %473 = vmatprep.subr.mxu0 0.0
  %474 = vmatpush1.msra.mxu0 0.0
  %475 = vmatprep.subr.mxu0 0.0
  %476 = vmatpush1.msra.mxu0 0.0
  %477 = vmatprep.subr.mxu0 0.0
  %478 = vmatpush1.msra.mxu0 0.0
  %479 = vmatprep.subr.mxu0 0.0
  %480 = vmatpush1.msra.mxu0 0.0
  %481 = vmatprep.subr.mxu0 0.0
  %482 = vmatpush1.msra.mxu0 0.0
  %483 = vmatprep.subr.mxu0 0.0
  %484 = vmatpush1.msra.mxu0 0.0
  %485 = vmatprep.mubr.f32.mxu0 0.0
  %486 = vmatmul.mubr.f32.gmra.mrb[0].mxu0 %v404
  %v487 = vpop.f32.mrb[0].mxu0
  %v488 = vadd.f32 0.0, %v487
  %v489 = vpop.f32.mrb[0].mxu0
  %490 = vdwg.mxu0
  %vm491 = vcmask 25600
  %492 = vst.msk [vmem:[%s4] sm:$0x3] %vm491, %v488
  // Predicated region
  $region18: #{mlp_forward.1} parent=0 // pred_check
    _
  $region19: #{mlp_forward.1} parent=0 // pred_check_branch
    %494 = sbr.rel (0) target = $region21
  $region20: #{mlp_forward.1} parent=0 // pred_region
    _
  $region21: #{mlp_forward.1} parent=0 // pred_fallthru
    _
  // Predicated region
  $region22: #{mlp_forward.1} parent=0 // pred_check
    _
  $region23: #{mlp_forward.1} parent=0 // pred_check_branch
    %496 = sbr.rel (0) target = $region25
  $region24: #{mlp_forward.1} parent=0 // pred_region
    _
  $region25: #{mlp_forward.1} parent=0 // pred_fallthru
    _

</llo_original>
